<compile_context>
chip_gen: v5e
topology: v5e:2x2
jax: 0.10.0
libtpu: 0.0.40
codegen_flags: <defaults>
</compile_context>

<pallas_src>
import jax
import jax.numpy as jnp
from jax.experimental import pallas as pl
from jax.experimental.pallas import tpu as pltpu


def _make_tlu_kernel(lo: float, hi: float):
    def kernel(x_ref, o_ref):
        # clamp(x, lo, hi) == min(max(x, lo), hi); lo/hi are immediates.
        o_ref[...] = jnp.minimum(jnp.maximum(x_ref[...], lo), hi)

    return kernel


_LANE_CANDIDATES = (1024, 512, 256, 128)   # lane-dense slab widths (x128)
_TARGET_BLOCK_BYTES = 4 * 1024 * 1024      # ~4 MiB per pipelined block


def tlu(x, threshold: float):
    """Elementwise clamp of x into [-threshold, threshold] via a Pallas kernel.

    Shape/dtype preserving; works for any input shape (NCHW activations here).
    """
    orig_shape = x.shape
    orig_dtype = x.dtype
    n = x.size
    if n == 0:
        return x

    # Widest lane width that divides n -> no padding copy in the common case.
    for lanes in _LANE_CANDIDATES:
        if n % lanes == 0:
            break
    else:
        lanes = _LANE_CANDIDATES[0]

    rows = pl.cdiv(n, lanes)
    padded_n = rows * lanes

    flat = x.reshape(-1)
    if padded_n != n:
        flat = jnp.pad(flat, (0, padded_n - n))
    x2d = flat.reshape(rows, lanes)

    # Rows per grid step: ~4 MiB per block, sublane(8)-aligned.
    itemsize = jnp.dtype(orig_dtype).itemsize
    target_rows = max(8, (_TARGET_BLOCK_BYTES // (lanes * itemsize)) // 8 * 8)
    if rows <= target_rows:
        tr = rows            # single block == full array (bypasses (8,128) rule)
    else:
        tr = target_rows     # multiple of 8; ragged last block masked by Pallas
    grid = pl.cdiv(rows, tr)

    kernel = _make_tlu_kernel(-float(threshold), float(threshold))

    out2d = pl.pallas_call(
        kernel,
        out_shape=jax.ShapeDtypeStruct((rows, lanes), orig_dtype),
        grid=(grid,),
        in_specs=[pl.BlockSpec((tr, lanes), lambda i: (i, 0))],
        out_specs=pl.BlockSpec((tr, lanes), lambda i: (i, 0)),
        compiler_params=pltpu.CompilerParams(
            dimension_semantics=("parallel",),
            vmem_limit_bytes=32 * 1024 * 1024,
        ),
    )(x2d)

    out_flat = out2d.reshape(-1)
    if padded_n != n:
        out_flat = out_flat[:n]
    return out_flat.reshape(orig_shape)


if __name__ == "__main__":
    key = jax.random.PRNGKey(0)
    # Small NCHW input consistent with a conv-net activation.
    x = jax.random.normal(key, (2, 4, 16, 16), dtype=jnp.float32) * 5.0
    threshold = 3.0  # TLU(threshold=3.0)

    out = jax.block_until_ready(tlu(x, threshold))

    # Sanity check against pure-JAX reference.
    ref = jnp.clip(x, -threshold, threshold)
    assert out.shape == x.shape and out.dtype == x.dtype
    assert jnp.allclose(out, ref), "TLU kernel mismatch vs reference"

    # Non-divisible size: exercises the tail-pad path (single ragged block).
    x_odd = jax.random.normal(jax.random.PRNGKey(1), (3, 5, 33, 130), jnp.float32) * 4.0
    out_odd = jax.block_until_ready(tlu(x_odd, 2.5))
    assert jnp.allclose(out_odd, jnp.clip(x_odd, -2.5, 2.5)), "TLU kernel mismatch (odd)"

    # Larger aligned size: exercises the multi-block pipelined path with a
    # ragged last grid block (grid > 1, no host-side padding).
    x_big = jax.random.normal(jax.random.PRNGKey(2), (4, 12, 96, 1000), jnp.float32) * 4.0
    out_big = jax.block_until_ready(tlu(x_big, 1.5))
    assert jnp.allclose(out_big, jnp.clip(x_big, -1.5, 1.5)), "TLU kernel mismatch (big)"

    print("KERNEL_OK")
</pallas_src>

<mosaic_0001>
module attributes {stable_mosaic.version = 11 : i64} {
  func.func @kernel(%arg0: i32, %arg1: memref<2x1024xf32, #tpu.memory_space<vmem>>, %arg2: memref<2x1024xf32, #tpu.memory_space<vmem>>) attributes {dimension_semantics = [#tpu.dimension_semantics<parallel>], iteration_bounds = array<i64: 1>, scalar_prefetch = 0 : i64, scratch_operands = 0 : i64, tpu.core_type = #tpu.core_type<tc>, window_params = [{transform_indices = @transform_0, window_bounds = array<i64: 2, 1024>}, {transform_indices = @transform_1, window_bounds = array<i64: 2, 1024>}]} {
    %c0 = arith.constant 0 : index
    %c0_0 = arith.constant 0 : index
    %0 = vector.load %arg1[%c0, %c0_0] : memref<2x1024xf32, #tpu.memory_space<vmem>>, vector<2x1024xf32>
    %cst = arith.constant -3.000000e+00 : f32
    %1 = vector.broadcast %cst : f32 to vector<2x1024xf32>
    %2 = arith.maximumf %0, %1 : vector<2x1024xf32>
    %cst_1 = arith.constant 3.000000e+00 : f32
    %3 = vector.broadcast %cst_1 : f32 to vector<2x1024xf32>
    %4 = arith.minimumf %2, %3 : vector<2x1024xf32>
    %c0_2 = arith.constant 0 : index
    %c0_3 = arith.constant 0 : index
    %5 = vector.load %arg2[%c0_2, %c0_3] : memref<2x1024xf32, #tpu.memory_space<vmem>>, vector<2x1024xf32>
    tpu.vector_store %arg2[%c0_2, %c0_3], %4 {strides = array<i32>} : memref<2x1024xf32, #tpu.memory_space<vmem>>, vector<2x1024xf32>,
    return
  }
  func.func @transform_0(%arg0: i32) -> (i32, i32) {
    %c0_i32 = arith.constant 0 : i32
    %c0_i32_0 = arith.constant 0 : i32
    return %arg0, %c0_i32 : i32, i32
  }
  func.func @transform_1(%arg0: i32) -> (i32, i32) {
    %c0_i32 = arith.constant 0 : i32
    %c0_i32_0 = arith.constant 0 : i32
    return %arg0, %c0_i32 : i32, i32
  }
}

</mosaic_0001>

<llo_original>
// kernel: tpu_custom_call.1
$region0: #{tpu_custom_call.1}
  #allocation0 [shape = 'u32[]', space=smem, size = 0x4, offset = 0x4, fixed_abs, tag = 'smem constant byte address 0x4 - core index']
  #allocation1 [shape = 'u32[72,128]{1,0:T(1,128)}', space=vmem, size = 0x9000, scoped, tag = 'internal scratch']
  %s0 = inlined_call_operand.hbm [shape: f32[2,1024], index: 0, kind: input, shape index: {}]
  %s1 = inlined_call_operand.hbm [shape: f32[2,1024], index: 1, kind: output, shape index: {}]
  %s2 = sld [smem:[#allocation0]]
  $region18: #{tpu_custom_call.1} parent=0
    _
  %s4 = ssub.s32 1, %s2
  %s5 = scalar_select 0, %s4, %s2
  $region1: #{tpu_custom_call.1} parent=0
    #allocation2 [shape = 'u8[8192]{0}', space=vmem, size = 0x2000, scoped, tag = 'input window, operand 0, single buffered']
    #allocation3 [shape = 's32[1]{0}', space=sflag, size = 0x4, scoped, tag = 'scoped memory for tpu_custom_call.1']
    #allocation4 [shape = 's32[1]{0}', space=sflag, size = 0x4, scoped, tag = 'scoped memory for tpu_custom_call.1']
    #allocation5 [shape = 'u8[8192]{0}', space=vmem, size = 0x2000, scoped, tag = 'output window, operand 0, single buffered']
    %6 = vsyncpa [#allocation3], 0
    %7 = vsyncpa [#allocation4], 0
    // Predicated region
    $region2: #{tpu_custom_call.1} parent=1 // pred_check
      _
    $region3: #{tpu_custom_call.1} parent=1 // pred_check_branch
      %9 = sbr.rel (0) target = $region5
    $region4: #{tpu_custom_call.1} parent=1 // pred_region
      %11 = vsyncadd [#allocation3], 0
      %s13 = sshll.u32 %s0, 4
      %s14 = int_to_ptr.hbm [resolvable:$true] %s13
      %s15 = sshll.u32 [#allocation2], 4
      %s16 = int_to_ptr.vmem [resolvable:$true] %s15
      %18 = dma.hbm_to_vmem [thread:$0]  %s14, 256, %s16, [#allocation3]
    $region5: #{tpu_custom_call.1} parent=1 // pred_fallthru
      _
    // Predicated region
    $region6: #{tpu_custom_call.1} parent=1 // pred_check
      _
    $region7: #{tpu_custom_call.1} parent=1 // pred_check_branch
      %20 = sbr.rel (0) target = $region9
    $region8: #{tpu_custom_call.1} parent=1 // pred_region
      %22 = dma.done [#allocation3], 256
    $region9: #{tpu_custom_call.1} parent=1 // pred_fallthru
      _
    %v23 = vld [vmem:[#allocation2] sm:$0xff]
    %v24 = vld [vmem:[#allocation2 + $0x8] sm:$0xff]
    %v25 = vmax.f32 %v23, -3.0
    %v26 = vmax.f32 %v24, -3.0
    %v27 = vmin.f32 %v25, 3.0
    %v28 = vmin.f32 %v26, 3.0
    %29 = vst [vmem:[#allocation5] sm:$0xff] %v27
    %30 = vst [vmem:[#allocation5 + $0x8] sm:$0xff] %v28
    // Predicated region
    $region10: #{tpu_custom_call.1} parent=1 // pred_check
      _
    $region11: #{tpu_custom_call.1} parent=1 // pred_check_branch
      %32 = sbr.rel (0) target = $region13
    $region12: #{tpu_custom_call.1} parent=1 // pred_region
      %34 = vsyncadd [#allocation4], 0
      %s36 = sshll.u32 [#allocation5], 4
      %s37 = int_to_ptr.vmem [resolvable:$true] %s36
      %s38 = sshll.u32 %s1, 4
      %s39 = int_to_ptr.hbm [resolvable:$true] %s38
      %41 = dma.vmem_to_hbm [thread:$0]  %s37, 256, %s39, [#allocation4]
    $region13: #{tpu_custom_call.1} parent=1 // pred_fallthru
      _
    // Predicated region
    $region14: #{tpu_custom_call.1} parent=1 // pred_check
      _
    $region15: #{tpu_custom_call.1} parent=1 // pred_check_branch
      %43 = sbr.rel (0) target = $region17
    $region16: #{tpu_custom_call.1} parent=1 // pred_region
      %45 = dma.done [#allocation4], 256
    $region17: #{tpu_custom_call.1} parent=1 // pred_fallthru
      _
    %46 = vsyncpa [#allocation3], 1
    %47 = vsyncpa [#allocation4], 1

</llo_original>
